<compile_context>
chip_gen: v5e
topology: v5e:2x2
jax: 0.10.0
libtpu: 0.0.40
codegen_flags: <defaults>
</compile_context>

<pallas_src>
import functools
import math

import jax
import jax.numpy as jnp
from jax.experimental import pallas as pl
from jax.experimental.pallas import tpu as pltpu


def _graph_filter_kernel(x_ref, s_ref, h_ref, b_ref, y_ref, *, k_taps):
    """One grid step == NB batch-blocks (each with BB batches folded into lanes).

    x_ref : [1, R, BBN]   VMEM  input rows (R = NB*G), batches folded into lanes
    s_ref : [BBN, BBN]    VMEM  block-diagonal shift operator (resident)
    h_ref : [K, RF, R]    VMEM  per-tap block-diagonal weights (RF = NB*F, resident)
    b_ref : [1]           SMEM  scalar bias
    y_ref : [1, RF, BBN]  VMEM  output rows (lane-dense)
    """
    s_op = s_ref[...]                                   # operand dtype, resident
    xk = x_ref[0]                                       # [R, BBN]
    # tap 0
    y = jnp.dot(h_ref[0], xk, preferred_element_type=jnp.float32)
    # taps 1..K-1 : diffuse then read out; K is small -> fully unrolled
    for k in range(1, k_taps):
        xk = jnp.dot(xk, s_op,
                     preferred_element_type=jnp.float32).astype(s_op.dtype)
        y = y + jnp.dot(h_ref[k], xk, preferred_element_type=jnp.float32)
    y_ref[0] = (y + b_ref[0]).astype(y_ref.dtype)


def graph_filter_pallas(x, gso, weight, bias, *,
                        operand_dtype=jnp.bfloat16,
                        out_dtype=jnp.float32,
                        rows_target=32):
    """x: [B, G, N], gso: [N, N], weight: [F, K, G], bias: [1] -> y: [B, F, N]."""
    B, G, N = x.shape
    F, K, G_w = weight.shape
    assert G_w == G and gso.shape == (N, N)

    # ---- node padding and batches-per-lane-block so the lane dim is a
    # multiple of 128 (BB capped at the minimum needed).
    if N % 128 == 0:
        n_pad = N
    elif N < 128:
        n_pad = -(-N // 8) * 8
    else:
        n_pad = -(-N // 128) * 128
    BB = 128 // math.gcd(n_pad, 128)          # == 1 when n_pad % 128 == 0
    BBN = BB * n_pad

    # ---- batch-blocks per grid step (sublane packing).  Keep grid >= 2 when
    # there are >= 2 batch-blocks so both v7x TensorCores get work.
    NBLK = -(-B // BB)
    NB = max(1, min(rows_target // max(G, 1), NBLK))
    if NBLK >= 2:
        NB = max(1, min(NB, NBLK // 2))
    NSTEP = -(-NBLK // NB)
    B_pad = NSTEP * NB * BB

    R, RF = NB * G, NB * F                    # rows per step: input / output

    # ---- wrapper-side layout: fold BB batches into lanes, stack NB blocks on
    # sublanes.  (Zero padding of nodes/batches is exact: padded rows/cols of S
    # are zero, padded batches produce only bias and are sliced away.)
    xp = jnp.zeros((B_pad, G, n_pad), x.dtype).at[:B, :, :N].set(x)
    x_flat = (xp.reshape(NSTEP, NB, BB, G, n_pad)
                .transpose(0, 1, 3, 2, 4)
                .reshape(NSTEP, R, BBN)
                .astype(operand_dtype))

    # Block-diagonal shift operator: per-batch diffusion as one lane-dense matmul.
    sp = jnp.zeros((n_pad, n_pad), jnp.float32).at[:N, :N].set(
        gso.astype(jnp.float32))
    s_bd = jnp.kron(jnp.eye(BB, dtype=jnp.float32), sp).astype(operand_dtype)

    # Per-tap block-diagonal weights: h_tap[k] = kron(I_NB, weight[:, k, :]).
    h_tap = jnp.einsum('ab,fkg->kafbg', jnp.eye(NB, dtype=jnp.float32),
                       weight.astype(jnp.float32))
    h_tap = h_tap.reshape(K, RF, R).astype(operand_dtype)

    bias_f32 = bias.astype(jnp.float32).reshape((1,))

    kernel = functools.partial(_graph_filter_kernel, k_taps=K)

    # Explicit VMEM budget (resident S + weights + pipelined x/y blocks).
    op_b = jnp.dtype(operand_dtype).itemsize
    out_b = jnp.dtype(out_dtype).itemsize
    need = (2 * BBN * BBN * op_b + 2 * K * RF * R * op_b
            + 2 * R * BBN * op_b + 2 * RF * BBN * out_b)
    vmem_limit = int(min(max(need + (16 << 20), 32 << 20), 100 << 20))

    def _call(resident_mode):
        extra = {} if resident_mode is None else {"pipeline_mode": resident_mode}
        return pl.pallas_call(
            kernel,
            out_shape=jax.ShapeDtypeStruct((NSTEP, RF, BBN), out_dtype),
            grid_spec=pltpu.PrefetchScalarGridSpec(
                num_scalar_prefetch=0,
                grid=(NSTEP,),
                in_specs=[
                    pl.BlockSpec((1, R, BBN), lambda i: (i, 0, 0)),      # x block
                    pl.BlockSpec((BBN, BBN), lambda i: (0, 0), **extra),  # S (resident)
                    pl.BlockSpec((K, RF, R), lambda i: (0, 0, 0), **extra),  # taps
                    pl.BlockSpec(memory_space=pltpu.MemorySpace.SMEM),   # scalar bias
                ],
                out_specs=pl.BlockSpec((1, RF, BBN), lambda i: (i, 0, 0)),
            ),
            compiler_params=pltpu.CompilerParams(
                dimension_semantics=("parallel",),
                vmem_limit_bytes=vmem_limit,
            ),
        )(x_flat, s_bd, h_tap, bias_f32)

    try:
        # Constant-index (resident) operands single-buffered: halves their VMEM.
        y_flat = _call(pl.Buffered(1))
    except Exception:
        # Fallback for jax versions without per-spec pipeline_mode support.
        y_flat = _call(None)

    # [NSTEP, RF, BBN] -> [B, F, N]   (layout plumbing; kernel stays lane-dense)
    y = (y_flat.reshape(NSTEP, NB, F, BB, n_pad)
               .transpose(0, 1, 3, 2, 4)
               .reshape(B_pad, F, n_pad))
    return y[:B, :, :N]


def graph_filter_reference(x, gso, weight, bias):
    """Pure-JAX reference mirroring the PyTorch FilterFunction + bias."""
    B, G, N = x.shape
    F, K, _ = weight.shape
    xk = x.astype(jnp.float32)
    y = jnp.zeros((B, F, N), jnp.float32)
    for k in range(K):
        y = y + jnp.einsum("fg,bgn->bfn", weight[:, k, :].astype(jnp.float32), xk)
        xk = jnp.einsum("bgn,nm->bgm", xk, gso.astype(jnp.float32))
    return y + bias[0]


if __name__ == "__main__":
    # small, module-consistent shapes
    B = 2        # batch
    f_in = 4     # G
    f_out = 8    # F
    K = 3        # filter taps
    N = 16       # graph nodes

    key = jax.random.PRNGKey(0)
    k_gso, k_x, k_w, k_b, k_x2 = jax.random.split(key, 5)

    # deterministic "gso": symmetric, zero-diagonal, row-normalized
    A = jax.random.uniform(k_gso, (N, N), jnp.float32)
    A = 0.5 * (A + A.T)
    A = A * (1.0 - jnp.eye(N, dtype=jnp.float32))
    gso = A / jnp.sum(A, axis=1, keepdims=True)

    # deterministic parameters (same distribution as reset_parameters)
    stdv = 0.1 / math.sqrt(f_in * K)
    weight = jax.random.uniform(k_w, (f_out, K, f_in), jnp.float32, -stdv, stdv)
    bias = jax.random.uniform(k_b, (1,), jnp.float32, -stdv, stdv)

    # input signal [B, f_in, N]
    x = jax.random.normal(k_x, (B, f_in, N), jnp.float32)
    y_ref = graph_filter_reference(x, gso, weight, bias)

    # strict check: f32 MXU operands (tolerance leaves headroom for the
    # multi-pass f32 MXU decomposition)
    y32 = jax.block_until_ready(
        graph_filter_pallas(x, gso, weight, bias,
                            operand_dtype=jnp.float32, out_dtype=jnp.float32))
    assert y32.shape == (B, f_out, N)
    assert jnp.allclose(y32, y_ref, atol=2e-3, rtol=2e-3), "f32 mismatch vs reference"

    # perf path: bf16 MXU operands, f32 accumulation / output
    y16 = jax.block_until_ready(graph_filter_pallas(x, gso, weight, bias))
    assert y16.shape == (B, f_out, N)
    assert jnp.allclose(y16, y_ref, atol=3e-2, rtol=3e-2), "bf16 mismatch vs reference"

    # sublane-packed, multi-step path (NB > 1, grid > 1, batch padding)
    B2 = 40
    x2 = jax.random.normal(k_x2, (B2, f_in, N), jnp.float32)
    y2_ref = graph_filter_reference(x2, gso, weight, bias)
    y2 = jax.block_until_ready(graph_filter_pallas(x2, gso, weight, bias))
    assert y2.shape == (B2, f_out, N)
    assert jnp.allclose(y2, y2_ref, atol=3e-2, rtol=3e-2), "bf16 multi-step mismatch"

    print("KERNEL_OK")
</pallas_src>

<mosaic_0001>
module attributes {stable_mosaic.version = 11 : i64} {
  func.func @_graph_filter_kernel(%arg0: i32, %arg1: memref<1x4x128xf32, #tpu.memory_space<vmem>>, %arg2: memref<128x128xf32, #tpu.memory_space<vmem>>, %arg3: memref<3x8x4xf32, #tpu.memory_space<vmem>>, %arg4: memref<1xf32, #tpu.memory_space<smem>>, %arg5: memref<1x8x128xf32, #tpu.memory_space<vmem>>) attributes {dimension_semantics = [#tpu.dimension_semantics<parallel>], iteration_bounds = array<i64: 1>, scalar_prefetch = 0 : i64, scratch_operands = 0 : i64, tpu.core_type = #tpu.core_type<tc>, window_params = [{transform_indices = @transform_0, window_bounds = array<i64: 1, 4, 128>}, {pipeline_mode = #tpu.pipeline_mode<synchronous>, transform_indices = @transform_1, window_bounds = array<i64: 128, 128>}, {pipeline_mode = #tpu.pipeline_mode<synchronous>, transform_indices = @transform_2, window_bounds = array<i64: 3, 8, 4>}, {transform_indices = @transform_3, window_bounds = array<i64: 1>}, {transform_indices = @transform_4, window_bounds = array<i64: 1, 8, 128>}]} {
    %c0 = arith.constant 0 : index
    %c0_0 = arith.constant 0 : index
    %0 = vector.load %arg2[%c0, %c0_0] : memref<128x128xf32, #tpu.memory_space<vmem>>, vector<128x128xf32>
    %c0_1 = arith.constant 0 : index
    %c0_2 = arith.constant 0 : index
    %c0_3 = arith.constant 0 : index
    %1 = vector.load %arg1[%c0_1, %c0_2, %c0_3] : memref<1x4x128xf32, #tpu.memory_space<vmem>>, vector<1x4x128xf32>
    %2 = vector.shape_cast %1 : vector<1x4x128xf32> to vector<4x128xf32>
    %c0_4 = arith.constant 0 : index
    %c0_5 = arith.constant 0 : index
    %c0_6 = arith.constant 0 : index
    %3 = vector.load %arg3[%c0_4, %c0_5, %c0_6] : memref<3x8x4xf32, #tpu.memory_space<vmem>>, vector<1x8x4xf32>
    %4 = vector.shape_cast %3 : vector<1x8x4xf32> to vector<8x4xf32>
    %cst = arith.constant dense<0.000000e+00> : vector<8x128xf32>
    %5 = tpu.matmul %4, %2, %cst {dimension_numbers = #tpu.dot_dimension_numbers<[1], [0], [0], [1], [0, 0, 1, 1], [], []>} : vector<8x4xf32>, vector<4x128xf32>, vector<8x128xf32> -> vector<8x128xf32>
    %cst_7 = arith.constant dense<0.000000e+00> : vector<4x128xf32>
    %6 = tpu.matmul %2, %0, %cst_7 {dimension_numbers = #tpu.dot_dimension_numbers<[1], [0], [0], [1], [0, 0, 1, 1], [], []>} : vector<4x128xf32>, vector<128x128xf32>, vector<4x128xf32> -> vector<4x128xf32>
    %c1 = arith.constant 1 : index
    %c0_8 = arith.constant 0 : index
    %c0_9 = arith.constant 0 : index
    %7 = vector.load %arg3[%c1, %c0_8, %c0_9] : memref<3x8x4xf32, #tpu.memory_space<vmem>>, vector<1x8x4xf32>
    %8 = vector.shape_cast %7 : vector<1x8x4xf32> to vector<8x4xf32>
    %cst_10 = arith.constant dense<0.000000e+00> : vector<8x128xf32>
    %9 = tpu.matmul %8, %6, %cst_10 {dimension_numbers = #tpu.dot_dimension_numbers<[1], [0], [0], [1], [0, 0, 1, 1], [], []>} : vector<8x4xf32>, vector<4x128xf32>, vector<8x128xf32> -> vector<8x128xf32>
    %10 = arith.addf %5, %9 : vector<8x128xf32>
    %cst_11 = arith.constant dense<0.000000e+00> : vector<4x128xf32>
    %11 = tpu.matmul %6, %0, %cst_11 {dimension_numbers = #tpu.dot_dimension_numbers<[1], [0], [0], [1], [0, 0, 1, 1], [], []>} : vector<4x128xf32>, vector<128x128xf32>, vector<4x128xf32> -> vector<4x128xf32>
    %c2 = arith.constant 2 : index
    %c0_12 = arith.constant 0 : index
    %c0_13 = arith.constant 0 : index
    %12 = vector.load %arg3[%c2, %c0_12, %c0_13] : memref<3x8x4xf32, #tpu.memory_space<vmem>>, vector<1x8x4xf32>
    %13 = vector.shape_cast %12 : vector<1x8x4xf32> to vector<8x4xf32>
    %cst_14 = arith.constant dense<0.000000e+00> : vector<8x128xf32>
    %14 = tpu.matmul %13, %11, %cst_14 {dimension_numbers = #tpu.dot_dimension_numbers<[1], [0], [0], [1], [0, 0, 1, 1], [], []>} : vector<8x4xf32>, vector<4x128xf32>, vector<8x128xf32> -> vector<8x128xf32>
    %15 = arith.addf %10, %14 : vector<8x128xf32>
    %c0_15 = arith.constant 0 : index
    %16 = memref.load %arg4[%c0_15] : memref<1xf32, #tpu.memory_space<smem>>
    %17 = vector.broadcast %16 : f32 to vector<8x128xf32>
    %18 = arith.addf %15, %17 : vector<8x128xf32>
    %c0_16 = arith.constant 0 : index
    %c0_17 = arith.constant 0 : index
    %c0_18 = arith.constant 0 : index
    %19 = vector.load %arg5[%c0_16, %c0_17, %c0_18] : memref<1x8x128xf32, #tpu.memory_space<vmem>>, vector<1x8x128xf32>
    %20 = vector.shape_cast %19 : vector<1x8x128xf32> to vector<8x128xf32>
    %21 = vector.shape_cast %18 : vector<8x128xf32> to vector<1x8x128xf32>
    tpu.vector_store %arg5[%c0_16, %c0_17, %c0_18], %21 {strides = array<i32>} : memref<1x8x128xf32, #tpu.memory_space<vmem>>, vector<1x8x128xf32>,
    return
  }
  func.func @transform_0(%arg0: i32) -> (i32, i32, i32) {
    %c0_i32 = arith.constant 0 : i32
    %c0_i32_0 = arith.constant 0 : i32
    %c0_i32_1 = arith.constant 0 : i32
    return %arg0, %c0_i32, %c0_i32_0 : i32, i32, i32
  }
  func.func @transform_1(%arg0: i32) -> (i32, i32) {
    %c0_i32 = arith.constant 0 : i32
    %c0_i32_0 = arith.constant 0 : i32
    %c0_i32_1 = arith.constant 0 : i32
    return %c0_i32, %c0_i32_0 : i32, i32
  }
  func.func @transform_2(%arg0: i32) -> (i32, i32, i32) {
    %c0_i32 = arith.constant 0 : i32
    %c0_i32_0 = arith.constant 0 : i32
    %c0_i32_1 = arith.constant 0 : i32
    %c0_i32_2 = arith.constant 0 : i32
    return %c0_i32, %c0_i32_0, %c0_i32_1 : i32, i32, i32
  }
  func.func @transform_3(%arg0: i32) -> i32 {
    %c0_i32 = arith.constant 0 : i32
    %c0_i32_0 = arith.constant 0 : i32
    return %c0_i32 : i32
  }
  func.func @transform_4(%arg0: i32) -> (i32, i32, i32) {
    %c0_i32 = arith.constant 0 : i32
    %c0_i32_0 = arith.constant 0 : i32
    %c0_i32_1 = arith.constant 0 : i32
    return %arg0, %c0_i32, %c0_i32_0 : i32, i32, i32
  }
}

module attributes {stable_mosaic.version = 11 : i64} {
  func.func @_graph_filter_kernel(%arg0: i32, %arg1: memref<1x4x128xf32, #tpu.memory_space<vmem>>, %arg2: memref<128x128xf32, #tpu.memory_space<vmem>>, %arg3: memref<3x8x4xf32, #tpu.memory_space<vmem>>, %arg4: memref<1xf32, #tpu.memory_space<smem>>, %arg5: memref<1x8x128xf32, #tpu.memory_space<vmem>>) attributes {dimension_semantics = [#tpu.dimension_semantics<parallel>], iteration_bounds = array<i64: 1>, scalar_prefetch = 0 : i64, scratch_operands = 0 : i64, tpu.core_type = #tpu.core_type<tc>, window_params = [{transform_indices = @transform_0, window_bounds = array<i64: 1, 4, 128>}, {pipeline_mode = #tpu.pipeline_mode<synchronous>, transform_indices = @transform_1, window_bounds = array<i64: 128, 128>}, {pipeline_mode = #tpu.pipeline_mode<synchronous>, transform_indices = @transform_2, window_bounds = array<i64: 3, 8, 4>}, {transform_indices = @transform_3, window_bounds = array<i64: 1>}, {transform_indices = @transform_4, window_bounds = array<i64: 1, 8, 128>}]} {
    %c0 = arith.constant 0 : index
    %c0_0 = arith.constant 0 : index
    %0 = vector.load %arg2[%c0, %c0_0] : memref<128x128xf32, #tpu.memory_space<vmem>>, vector<128x128xf32>
    %c0_1 = arith.constant 0 : index
    %c0_2 = arith.constant 0 : index
    %c0_3 = arith.constant 0 : index
    %1 = vector.load %arg1[%c0_1, %c0_2, %c0_3] : memref<1x4x128xf32, #tpu.memory_space<vmem>>, vector<1x4x128xf32>
    %2 = vector.shape_cast %1 : vector<1x4x128xf32> to vector<4x128xf32>
    %c0_4 = arith.constant 0 : index
    %c0_5 = arith.constant 0 : index
    %c0_6 = arith.constant 0 : index
    %3 = vector.load %arg3[%c0_4, %c0_5, %c0_6] : memref<3x8x4xf32, #tpu.memory_space<vmem>>, vector<1x8x4xf32>
    %4 = vector.shape_cast %3 : vector<1x8x4xf32> to vector<8x4xf32>
    %cst = arith.constant dense<0.000000e+00> : vector<8x128xf32>
    %5 = tpu.matmul %4, %2, %cst {dimension_numbers = #tpu.dot_dimension_numbers<[1], [0], [0], [1], [0, 0, 1, 1], [], []>} : vector<8x4xf32>, vector<4x128xf32>, vector<8x128xf32> -> vector<8x128xf32>
    %cst_7 = arith.constant dense<0.000000e+00> : vector<4x128xf32>
    %6 = tpu.matmul %2, %0, %cst_7 {dimension_numbers = #tpu.dot_dimension_numbers<[1], [0], [0], [1], [0, 0, 1, 1], [], []>} : vector<4x128xf32>, vector<128x128xf32>, vector<4x128xf32> -> vector<4x128xf32>
    %c1 = arith.constant 1 : index
    %c0_8 = arith.constant 0 : index
    %c0_9 = arith.constant 0 : index
    %7 = vector.load %arg3[%c1, %c0_8, %c0_9] : memref<3x8x4xf32, #tpu.memory_space<vmem>>, vector<1x8x4xf32>
    %8 = vector.shape_cast %7 : vector<1x8x4xf32> to vector<8x4xf32>
    %cst_10 = arith.constant dense<0.000000e+00> : vector<8x128xf32>
    %9 = tpu.matmul %8, %6, %cst_10 {dimension_numbers = #tpu.dot_dimension_numbers<[1], [0], [0], [1], [0, 0, 1, 1], [], []>} : vector<8x4xf32>, vector<4x128xf32>, vector<8x128xf32> -> vector<8x128xf32>
    %10 = arith.addf %5, %9 : vector<8x128xf32>
    %cst_11 = arith.constant dense<0.000000e+00> : vector<4x128xf32>
    %11 = tpu.matmul %6, %0, %cst_11 {dimension_numbers = #tpu.dot_dimension_numbers<[1], [0], [0], [1], [0, 0, 1, 1], [], []>} : vector<4x128xf32>, vector<128x128xf32>, vector<4x128xf32> -> vector<4x128xf32>
    %c2 = arith.constant 2 : index
    %c0_12 = arith.constant 0 : index
    %c0_13 = arith.constant 0 : index
    %12 = vector.load %arg3[%c2, %c0_12, %c0_13] : memref<3x8x4xf32, #tpu.memory_space<vmem>>, vector<1x8x4xf32>
    %13 = vector.shape_cast %12 : vector<1x8x4xf32> to vector<8x4xf32>
    %cst_14 = arith.constant dense<0.000000e+00> : vector<8x128xf32>
    %14 = tpu.matmul %13, %11, %cst_14 {dimension_numbers = #tpu.dot_dimension_numbers<[1], [0], [0], [1], [0, 0, 1, 1], [], []>} : vector<8x4xf32>, vector<4x128xf32>, vector<8x128xf32> -> vector<8x128xf32>
    %15 = arith.addf %10, %14 : vector<8x128xf32>
    %c0_15 = arith.constant 0 : index
    %16 = memref.load %arg4[%c0_15] : memref<1xf32, #tpu.memory_space<smem>>
    %17 = vector.broadcast %16 : f32 to vector<8x128xf32>
    %18 = arith.addf %15, %17 : vector<8x128xf32>
    %c0_16 = arith.constant 0 : index
    %c0_17 = arith.constant 0 : index
    %c0_18 = arith.constant 0 : index
    %19 = vector.load %arg5[%c0_16, %c0_17, %c0_18] : memref<1x8x128xf32, #tpu.memory_space<vmem>>, vector<1x8x128xf32>
    %20 = vector.shape_cast %19 : vector<1x8x128xf32> to vector<8x128xf32>
    %21 = vector.shape_cast %18 : vector<8x128xf32> to vector<1x8x128xf32>
    tpu.vector_store %arg5[%c0_16, %c0_17, %c0_18], %21 {strides = array<i32>} : memref<1x8x128xf32, #tpu.memory_space<vmem>>, vector<1x8x128xf32>,
    return
  }
  func.func @transform_0(%arg0: i32) -> (i32, i32, i32) {
    %c0_i32 = arith.constant 0 : i32
    %c0_i32_0 = arith.constant 0 : i32
    %c0_i32_1 = arith.constant 0 : i32
    return %arg0, %c0_i32, %c0_i32_0 : i32, i32, i32
  }
  func.func @transform_1(%arg0: i32) -> (i32, i32) {
    %c0_i32 = arith.constant 0 : i32
    %c0_i32_0 = arith.constant 0 : i32
    %c0_i32_1 = arith.constant 0 : i32
    return %c0_i32, %c0_i32_0 : i32, i32
  }
  func.func @transform_2(%arg0: i32) -> (i32, i32, i32) {
    %c0_i32 = arith.constant 0 : i32
    %c0_i32_0 = arith.constant 0 : i32
    %c0_i32_1 = arith.constant 0 : i32
    %c0_i32_2 = arith.constant 0 : i32
    return %c0_i32, %c0_i32_0, %c0_i32_1 : i32, i32, i32
  }
  func.func @transform_3(%arg0: i32) -> i32 {
    %c0_i32 = arith.constant 0 : i32
    %c0_i32_0 = arith.constant 0 : i32
    return %c0_i32 : i32
  }
  func.func @transform_4(%arg0: i32) -> (i32, i32, i32) {
    %c0_i32 = arith.constant 0 : i32
    %c0_i32_0 = arith.constant 0 : i32
    %c0_i32_1 = arith.constant 0 : i32
    return %arg0, %c0_i32, %c0_i32_0 : i32, i32, i32
  }
}

</mosaic_0001>

<llo_original>
// kernel: tpu_custom_call.1
$region0: #{tpu_custom_call.1}
  #allocation0 [shape = 'u32[]', space=smem, size = 0x4, offset = 0x4, fixed_abs, tag = 'smem constant byte address 0x4 - core index']
  #allocation1 [shape = 'u32[72,128]{1,0:T(1,128)}', space=vmem, size = 0x9000, scoped, tag = 'internal scratch']
  #allocation2 [shape = 'f32[1]{0:T(128)S(6)}', space=smem, size = 0x200, scoped, tag = 'scoped memory for tpu_custom_call.1']
  %s0 = inlined_call_operand.vmem [shape: f32[1,4,128], index: 0, kind: input, shape index: {}]
  %s1 = inlined_call_operand.hbm [shape: f32[128,128], index: 1, kind: input, shape index: {}]
  %s2 = inlined_call_operand.vmem [shape: f32[3,8,4], index: 2, kind: input, shape index: {}]
  %s3 = inlined_call_operand.<no memory space> [shape: f32[1], index: 3, kind: input, shape index: {}]
  %s4 = inlined_call_operand.hbm [shape: f32[1,8,128], index: 4, kind: output, shape index: {}]
  %s5 = sld [smem:[#allocation0]]
  $region30: #{tpu_custom_call.1} parent=0
    _
  %s7 = ssub.s32 1, %s5
  %s8 = scalar_select 0, %s7, %s5
  %9 = sst [smem:[#allocation2]] %s3
  $region1: #{tpu_custom_call.1} parent=0
    #allocation3 [shape = 'u8[65536]{0}', space=vmem, size = 0x10000, scoped, tag = 'input window, operand 1, single buffered']
    #allocation4 [shape = 's32[1]{0}', space=sflag, size = 0x4, scoped, tag = 'scoped memory for tpu_custom_call.1']
    #allocation5 [shape = 's32[1]{0}', space=sflag, size = 0x4, scoped, tag = 'scoped memory for tpu_custom_call.1']
    #allocation6 [shape = 'u8[4096]{0}', space=vmem, size = 0x1000, scoped, tag = 'output window, operand 0, single buffered']
    %10 = vsyncpa [#allocation4], 0
    %11 = vsyncpa [#allocation5], 0
    // Predicated region
    $region2: #{tpu_custom_call.1} parent=1 // pred_check
      _
    $region3: #{tpu_custom_call.1} parent=1 // pred_check_branch
      %13 = sbr.rel (0) target = $region5
    $region4: #{tpu_custom_call.1} parent=1 // pred_region
      _
    $region5: #{tpu_custom_call.1} parent=1 // pred_fallthru
      _
    // Predicated region
    $region6: #{tpu_custom_call.1} parent=1 // pred_check
      _
    $region7: #{tpu_custom_call.1} parent=1 // pred_check_branch
      %15 = sbr.rel (0) target = $region9
    $region8: #{tpu_custom_call.1} parent=1 // pred_region
      %17 = vsyncadd [#allocation4], 0
      %s18 = sshll.u32 %s1, 4
      %s19 = int_to_ptr.hbm [resolvable:$true] %s18
      %s20 = sshll.u32 [#allocation3], 4
      %s21 = int_to_ptr.vmem [resolvable:$true] %s20
      %26 = dma.hbm_to_vmem [thread:$0]  %s19, 2048, %s21, [#allocation4], 128, 128, 8
    $region9: #{tpu_custom_call.1} parent=1 // pred_fallthru
      _
    // Predicated region
    $region10: #{tpu_custom_call.1} parent=1 // pred_check
      _
    $region11: #{tpu_custom_call.1} parent=1 // pred_check_branch
      %28 = sbr.rel (0) target = $region13
    $region12: #{tpu_custom_call.1} parent=1 // pred_region
      _
    $region13: #{tpu_custom_call.1} parent=1 // pred_fallthru
      _
    // Predicated region
    $region14: #{tpu_custom_call.1} parent=1 // pred_check
      _
    $region15: #{tpu_custom_call.1} parent=1 // pred_check_branch
      %30 = sbr.rel (0) target = $region17
    $region16: #{tpu_custom_call.1} parent=1 // pred_region
      _
    $region17: #{tpu_custom_call.1} parent=1 // pred_fallthru
      _
    // Predicated region
    $region18: #{tpu_custom_call.1} parent=1 // pred_check
      _
    $region19: #{tpu_custom_call.1} parent=1 // pred_check_branch
      %32 = sbr.rel (0) target = $region21
    $region20: #{tpu_custom_call.1} parent=1 // pred_region
      %34 = dma.done [#allocation4], 2048
    $region21: #{tpu_custom_call.1} parent=1 // pred_fallthru
      _
    %v35 = vld [vmem:[#allocation3] sm:$0xff]
    %v36 = vld [vmem:[#allocation3 + $0x8] sm:$0xff]
    %v37 = vld [vmem:[#allocation3 + $0x10] sm:$0xff]
    %v38 = vld [vmem:[#allocation3 + $0x18] sm:$0xff]
    %v39 = vld [vmem:[#allocation3 + $0x20] sm:$0xff]
    %v40 = vld [vmem:[#allocation3 + $0x28] sm:$0xff]
    %v41 = vld [vmem:[#allocation3 + $0x30] sm:$0xff]
    %v42 = vld [vmem:[#allocation3 + $0x38] sm:$0xff]
    %v43 = vld [vmem:[#allocation3 + $0x40] sm:$0xff]
    %v44 = vld [vmem:[#allocation3 + $0x48] sm:$0xff]
    %v45 = vld [vmem:[#allocation3 + $0x50] sm:$0xff]
    %v46 = vld [vmem:[#allocation3 + $0x58] sm:$0xff]
    %v47 = vld [vmem:[#allocation3 + $0x60] sm:$0xff]
    %v48 = vld [vmem:[#allocation3 + $0x68] sm:$0xff]
    %v49 = vld [vmem:[#allocation3 + $0x70] sm:$0xff]
    %v50 = vld [vmem:[#allocation3 + $0x78] sm:$0xff]
    %v51 = vld [vmem:[%s0] sm:$0xf]
    %v52 = vld [vmem:[%s2] sm:$0xff]
    %53 = vmatpush.msra.mxu0 %v50
    %54 = vmatpush.msra.mxu0 %v49
    %55 = vmatpush.msra.mxu0 %v48
    %56 = vmatpush.msra.mxu0 %v47
    %57 = vmatpush.msra.mxu0 %v46
    %58 = vmatpush.msra.mxu0 %v45
    %59 = vmatpush.msra.mxu0 %v44
    %60 = vmatpush.msra.mxu0 %v43
    %61 = vmatpush.msra.mxu0 %v42
    %62 = vmatpush.msra.mxu0 %v41
    %63 = vmatpush.msra.mxu0 %v40
    %64 = vmatpush.msra.mxu0 %v39
    %65 = vmatpush.msra.mxu0 %v38
    %66 = vmatpush.msra.mxu0 %v37
    %67 = vmatpush.msra.mxu0 %v36
    %68 = vmatpush.msra.mxu0 %v35
    %69 = vmatmul.f32.gmra.mxu0 %v51
    %v70 = vpop.f32.mrf.mxu0
    %v71 = vadd.f32 0.0, %v70
    %72 = vdwg.mxu0
    %s73 = scalar_lea.vmem %s2, 8
    %v74 = vld [vmem:[%s73] sm:$0xff]
    %vm75 = vcmask 31744
    %v77 = vsel %vm75, %v74, 0
    %vm79 = vcmask 1043456
    %v81 = vsel %vm79, %v71, 0
    %83 = vmatpush.msra.mxu0 0.0
    %84 = vmatpush.msra.mxu0 0.0
    %85 = vmatpush.msra.mxu0 0.0
    %86 = vmatpush.msra.mxu0 0.0
    %87 = vmatpush.msra.mxu0 0.0
    %88 = vmatpush.msra.mxu0 0.0
    %89 = vmatpush.msra.mxu0 0.0
    %90 = vmatpush.msra.mxu0 0.0
    %91 = vmatpush.msra.mxu0 0.0
    %92 = vmatpush.msra.mxu0 0.0
    %93 = vmatpush.msra.mxu0 0.0
    %94 = vmatpush.msra.mxu0 0.0
    %95 = vmatpush.msra.mxu0 0.0
    %96 = vmatpush.msra.mxu0 0.0
    %97 = vmatpush.msra.mxu0 0.0
    %98 = vmatpush.msra.mxu0 %v81
    %99 = vmatmul.f32.gmra.mxu0 %v77
    %v100 = vpop.f32.mrf.mxu0
    %v101 = vadd.f32 0.0, %v100
    %102 = vdwg.mxu0
    %v104 = vsel %vm75, %v52, 0
    %v107 = vsel %vm79, %v51, 0
    %109 = vmatpush.msra.mxu0 0.0
    %110 = vmatpush.msra.mxu0 0.0
    %111 = vmatpush.msra.mxu0 0.0
    %112 = vmatpush.msra.mxu0 0.0
    %113 = vmatpush.msra.mxu0 0.0
    %114 = vmatpush.msra.mxu0 0.0
    %115 = vmatpush.msra.mxu0 0.0
    %116 = vmatpush.msra.mxu0 0.0
    %117 = vmatpush.msra.mxu0 0.0
    %118 = vmatpush.msra.mxu0 0.0
    %119 = vmatpush.msra.mxu0 0.0
    %120 = vmatpush.msra.mxu0 0.0
    %121 = vmatpush.msra.mxu0 0.0
    %122 = vmatpush.msra.mxu0 0.0
    %123 = vmatpush.msra.mxu0 0.0
    %124 = vmatpush.msra.mxu0 %v107
    %125 = vmatmul.f32.gmra.mxu0 %v104
    %v126 = vpop.f32.mrf.mxu0
    %v127 = vadd.f32 %v101, %v126
    %128 = vdwg.mxu0
    %129 = vmatpush.msra.mxu0 %v50
    %130 = vmatpush.msra.mxu0 %v49
    %131 = vmatpush.msra.mxu0 %v48
    %132 = vmatpush.msra.mxu0 %v47
    %133 = vmatpush.msra.mxu0 %v46
    %134 = vmatpush.msra.mxu0 %v45
    %135 = vmatpush.msra.mxu0 %v44
    %136 = vmatpush.msra.mxu0 %v43
    %137 = vmatpush.msra.mxu0 %v42
    %138 = vmatpush.msra.mxu0 %v41
    %139 = vmatpush.msra.mxu0 %v40
    %140 = vmatpush.msra.mxu0 %v39
    %141 = vmatpush.msra.mxu0 %v38
    %142 = vmatpush.msra.mxu0 %v37
    %143 = vmatpush.msra.mxu0 %v36
    %144 = vmatpush.msra.mxu0 %v35
    %145 = vmatmul.f32.gmra.mxu0 %v71
    %v146 = vpop.f32.mrf.mxu0
    %v147 = vadd.f32 0.0, %v146
    %148 = vdwg.mxu0
    %s149 = scalar_lea.vmem %s2, 16
    %v150 = vld [vmem:[%s149] sm:$0xff]
    %v152 = vsel %vm75, %v150, 0
    %v155 = vsel %vm79, %v147, 0
    %157 = vmatpush.msra.mxu0 0.0
    %158 = vmatpush.msra.mxu0 0.0
    %159 = vmatpush.msra.mxu0 0.0
    %160 = vmatpush.msra.mxu0 0.0
    %161 = vmatpush.msra.mxu0 0.0
    %162 = vmatpush.msra.mxu0 0.0
    %163 = vmatpush.msra.mxu0 0.0
    %164 = vmatpush.msra.mxu0 0.0
    %165 = vmatpush.msra.mxu0 0.0
    %166 = vmatpush.msra.mxu0 0.0
    %167 = vmatpush.msra.mxu0 0.0
    %168 = vmatpush.msra.mxu0 0.0
    %169 = vmatpush.msra.mxu0 0.0
    %170 = vmatpush.msra.mxu0 0.0
    %171 = vmatpush.msra.mxu0 0.0
    %172 = vmatpush.msra.mxu0 %v155
    %173 = vmatmul.f32.gmra.mxu0 %v152
    %v174 = vpop.f32.mrf.mxu0
    %v175 = vadd.f32 0.0, %v174
    %176 = vdwg.mxu0
    %v177 = vadd.f32 %v127, %v175
    %s178 = sld [smem:[#allocation2]]
    %v179 = vstv %s178
    %v180 = vadd.f32 %v177, %v179
    %181 = vst [vmem:[#allocation6] sm:$0xff] %v180
    // Predicated region
    $region22: #{tpu_custom_call.1} parent=1 // pred_check
      _
    $region23: #{tpu_custom_call.1} parent=1 // pred_check_branch
      %183 = sbr.rel (0) target = $region25
    $region24: #{tpu_custom_call.1} parent=1 // pred_region
      %185 = vsyncadd [#allocation5], 0
      %s187 = sshll.u32 [#allocation6], 4
      %s188 = int_to_ptr.vmem [resolvable:$true] %s187
      %s189 = sshll.u32 %s4, 4
      %s190 = int_to_ptr.hbm [resolvable:$true] %s189
      %192 = dma.vmem_to_hbm [thread:$0]  %s188, 128, %s190, [#allocation5]
    $region25: #{tpu_custom_call.1} parent=1 // pred_fallthru
      _
    // Predicated region
    $region26: #{tpu_custom_call.1} parent=1 // pred_check
      _
    $region27: #{tpu_custom_call.1} parent=1 // pred_check_branch
      %194 = sbr.rel (0) target = $region29
    $region28: #{tpu_custom_call.1} parent=1 // pred_region
      %196 = dma.done [#allocation5], 128
    $region29: #{tpu_custom_call.1} parent=1 // pred_fallthru
      _
    %197 = vsyncpa [#allocation4], 1
    %198 = vsyncpa [#allocation5], 1

// kernel: tpu_custom_call.1
$region0: #{tpu_custom_call.1}
  #allocation0 [shape = 'u32[]', space=smem, size = 0x4, offset = 0x4, fixed_abs, tag = 'smem constant byte address 0x4 - core index']
  #allocation1 [shape = 'u32[72,128]{1,0:T(1,128)}', space=vmem, size = 0x9000, scoped, tag = 'internal scratch']
  #allocation2 [shape = 'f32[1]{0:T(128)S(6)}', space=smem, size = 0x200, scoped, tag = 'scoped memory for tpu_custom_call.1']
  %s0 = inlined_call_operand.vmem [shape: f32[1,4,128], index: 0, kind: input, shape index: {}]
  %s1 = inlined_call_operand.hbm [shape: f32[128,128], index: 1, kind: input, shape index: {}]
  %s2 = inlined_call_operand.vmem [shape: f32[3,8,4], index: 2, kind: input, shape index: {}]
  %s3 = inlined_call_operand.<no memory space> [shape: f32[1], index: 3, kind: input, shape index: {}]
  %s4 = inlined_call_operand.hbm [shape: f32[1,8,128], index: 4, kind: output, shape index: {}]
  %s5 = sld [smem:[#allocation0]]
  $region30: #{tpu_custom_call.1} parent=0
    _
  %s7 = ssub.s32 1, %s5
  %s8 = scalar_select 0, %s7, %s5
  %9 = sst [smem:[#allocation2]] %s3
  $region1: #{tpu_custom_call.1} parent=0
    #allocation3 [shape = 'u8[65536]{0}', space=vmem, size = 0x10000, scoped, tag = 'input window, operand 1, single buffered']
    #allocation4 [shape = 's32[1]{0}', space=sflag, size = 0x4, scoped, tag = 'scoped memory for tpu_custom_call.1']
    #allocation5 [shape = 's32[1]{0}', space=sflag, size = 0x4, scoped, tag = 'scoped memory for tpu_custom_call.1']
    #allocation6 [shape = 'u8[4096]{0}', space=vmem, size = 0x1000, scoped, tag = 'output window, operand 0, single buffered']
    %10 = vsyncpa [#allocation4], 0
    %11 = vsyncpa [#allocation5], 0
    // Predicated region
    $region2: #{tpu_custom_call.1} parent=1 // pred_check
      _
    $region3: #{tpu_custom_call.1} parent=1 // pred_check_branch
      %13 = sbr.rel (0) target = $region5
    $region4: #{tpu_custom_call.1} parent=1 // pred_region
      _
    $region5: #{tpu_custom_call.1} parent=1 // pred_fallthru
      _
    // Predicated region
    $region6: #{tpu_custom_call.1} parent=1 // pred_check
      _
    $region7: #{tpu_custom_call.1} parent=1 // pred_check_branch
      %15 = sbr.rel (0) target = $region9
    $region8: #{tpu_custom_call.1} parent=1 // pred_region
      %17 = vsyncadd [#allocation4], 0
      %s18 = sshll.u32 %s1, 4
      %s19 = int_to_ptr.hbm [resolvable:$true] %s18
      %s20 = sshll.u32 [#allocation3], 4
      %s21 = int_to_ptr.vmem [resolvable:$true] %s20
      %26 = dma.hbm_to_vmem [thread:$0]  %s19, 2048, %s21, [#allocation4], 128, 128, 8
    $region9: #{tpu_custom_call.1} parent=1 // pred_fallthru
      _
    // Predicated region
    $region10: #{tpu_custom_call.1} parent=1 // pred_check
      _
    $region11: #{tpu_custom_call.1} parent=1 // pred_check_branch
      %28 = sbr.rel (0) target = $region13
    $region12: #{tpu_custom_call.1} parent=1 // pred_region
      _
    $region13: #{tpu_custom_call.1} parent=1 // pred_fallthru
      _
    // Predicated region
    $region14: #{tpu_custom_call.1} parent=1 // pred_check
      _
    $region15: #{tpu_custom_call.1} parent=1 // pred_check_branch
      %30 = sbr.rel (0) target = $region17
    $region16: #{tpu_custom_call.1} parent=1 // pred_region
      _
    $region17: #{tpu_custom_call.1} parent=1 // pred_fallthru
      _
    // Predicated region
    $region18: #{tpu_custom_call.1} parent=1 // pred_check
      _
    $region19: #{tpu_custom_call.1} parent=1 // pred_check_branch
      %32 = sbr.rel (0) target = $region21
    $region20: #{tpu_custom_call.1} parent=1 // pred_region
      %34 = dma.done [#allocation4], 2048
    $region21: #{tpu_custom_call.1} parent=1 // pred_fallthru
      _
    %v35 = vld [vmem:[#allocation3] sm:$0xff]
    %v36 = vld [vmem:[#allocation3 + $0x8] sm:$0xff]
    %v37 = vld [vmem:[#allocation3 + $0x10] sm:$0xff]
    %v38 = vld [vmem:[#allocation3 + $0x18] sm:$0xff]
    %v39 = vld [vmem:[#allocation3 + $0x20] sm:$0xff]
    %v40 = vld [vmem:[#allocation3 + $0x28] sm:$0xff]
    %v41 = vld [vmem:[#allocation3 + $0x30] sm:$0xff]
    %v42 = vld [vmem:[#allocation3 + $0x38] sm:$0xff]
    %v43 = vld [vmem:[#allocation3 + $0x40] sm:$0xff]
    %v44 = vld [vmem:[#allocation3 + $0x48] sm:$0xff]
    %v45 = vld [vmem:[#allocation3 + $0x50] sm:$0xff]
    %v46 = vld [vmem:[#allocation3 + $0x58] sm:$0xff]
    %v47 = vld [vmem:[#allocation3 + $0x60] sm:$0xff]
    %v48 = vld [vmem:[#allocation3 + $0x68] sm:$0xff]
    %v49 = vld [vmem:[#allocation3 + $0x70] sm:$0xff]
    %v50 = vld [vmem:[#allocation3 + $0x78] sm:$0xff]
    %v51 = vld [vmem:[%s0] sm:$0xf]
    %v52 = vld [vmem:[%s2] sm:$0xff]
    %53 = vmatpush.msra.mxu0 %v50
    %54 = vmatpush.msra.mxu0 %v49
    %55 = vmatpush.msra.mxu0 %v48
    %56 = vmatpush.msra.mxu0 %v47
    %57 = vmatpush.msra.mxu0 %v46
    %58 = vmatpush.msra.mxu0 %v45
    %59 = vmatpush.msra.mxu0 %v44
    %60 = vmatpush.msra.mxu0 %v43
    %61 = vmatpush.msra.mxu0 %v42
    %62 = vmatpush.msra.mxu0 %v41
    %63 = vmatpush.msra.mxu0 %v40
    %64 = vmatpush.msra.mxu0 %v39
    %65 = vmatpush.msra.mxu0 %v38
    %66 = vmatpush.msra.mxu0 %v37
    %67 = vmatpush.msra.mxu0 %v36
    %68 = vmatpush.msra.mxu0 %v35
    %69 = vmatmul.f32.gmra.mxu0 %v51
    %v70 = vpop.f32.mrf.mxu0
    %v71 = vadd.f32 0.0, %v70
    %72 = vdwg.mxu0
    %s73 = scalar_lea.vmem %s2, 8
    %v74 = vld [vmem:[%s73] sm:$0xff]
    %vm75 = vcmask 31744
    %v77 = vsel %vm75, %v74, 0
    %vm79 = vcmask 1043456
    %v81 = vsel %vm79, %v71, 0
    %83 = vmatpush.msra.mxu0 0.0
    %84 = vmatpush.msra.mxu0 0.0
    %85 = vmatpush.msra.mxu0 0.0
    %86 = vmatpush.msra.mxu0 0.0
    %87 = vmatpush.msra.mxu0 0.0
    %88 = vmatpush.msra.mxu0 0.0
    %89 = vmatpush.msra.mxu0 0.0
    %90 = vmatpush.msra.mxu0 0.0
    %91 = vmatpush.msra.mxu0 0.0
    %92 = vmatpush.msra.mxu0 0.0
    %93 = vmatpush.msra.mxu0 0.0
    %94 = vmatpush.msra.mxu0 0.0
    %95 = vmatpush.msra.mxu0 0.0
    %96 = vmatpush.msra.mxu0 0.0
    %97 = vmatpush.msra.mxu0 0.0
    %98 = vmatpush.msra.mxu0 %v81
    %99 = vmatmul.f32.gmra.mxu0 %v77
    %v100 = vpop.f32.mrf.mxu0
    %v101 = vadd.f32 0.0, %v100
    %102 = vdwg.mxu0
    %v104 = vsel %vm75, %v52, 0
    %v107 = vsel %vm79, %v51, 0
    %109 = vmatpush.msra.mxu0 0.0
    %110 = vmatpush.msra.mxu0 0.0
    %111 = vmatpush.msra.mxu0 0.0
    %112 = vmatpush.msra.mxu0 0.0
    %113 = vmatpush.msra.mxu0 0.0
    %114 = vmatpush.msra.mxu0 0.0
    %115 = vmatpush.msra.mxu0 0.0
    %116 = vmatpush.msra.mxu0 0.0
    %117 = vmatpush.msra.mxu0 0.0
    %118 = vmatpush.msra.mxu0 0.0
    %119 = vmatpush.msra.mxu0 0.0
    %120 = vmatpush.msra.mxu0 0.0
    %121 = vmatpush.msra.mxu0 0.0
    %122 = vmatpush.msra.mxu0 0.0
    %123 = vmatpush.msra.mxu0 0.0
    %124 = vmatpush.msra.mxu0 %v107
    %125 = vmatmul.f32.gmra.mxu0 %v104
    %v126 = vpop.f32.mrf.mxu0
    %v127 = vadd.f32 %v101, %v126
    %128 = vdwg.mxu0
    %129 = vmatpush.msra.mxu0 %v50
    %130 = vmatpush.msra.mxu0 %v49
    %131 = vmatpush.msra.mxu0 %v48
    %132 = vmatpush.msra.mxu0 %v47
    %133 = vmatpush.msra.mxu0 %v46
    %134 = vmatpush.msra.mxu0 %v45
    %135 = vmatpush.msra.mxu0 %v44
    %136 = vmatpush.msra.mxu0 %v43
    %137 = vmatpush.msra.mxu0 %v42
    %138 = vmatpush.msra.mxu0 %v41
    %139 = vmatpush.msra.mxu0 %v40
    %140 = vmatpush.msra.mxu0 %v39
    %141 = vmatpush.msra.mxu0 %v38
    %142 = vmatpush.msra.mxu0 %v37
    %143 = vmatpush.msra.mxu0 %v36
    %144 = vmatpush.msra.mxu0 %v35
    %145 = vmatmul.f32.gmra.mxu0 %v71
    %v146 = vpop.f32.mrf.mxu0
    %v147 = vadd.f32 0.0, %v146
    %148 = vdwg.mxu0
    %s149 = scalar_lea.vmem %s2, 16
    %v150 = vld [vmem:[%s149] sm:$0xff]
    %v152 = vsel %vm75, %v150, 0
    %v155 = vsel %vm79, %v147, 0
    %157 = vmatpush.msra.mxu0 0.0
    %158 = vmatpush.msra.mxu0 0.0
    %159 = vmatpush.msra.mxu0 0.0
    %160 = vmatpush.msra.mxu0 0.0
    %161 = vmatpush.msra.mxu0 0.0
    %162 = vmatpush.msra.mxu0 0.0
    %163 = vmatpush.msra.mxu0 0.0
    %164 = vmatpush.msra.mxu0 0.0
    %165 = vmatpush.msra.mxu0 0.0
    %166 = vmatpush.msra.mxu0 0.0
    %167 = vmatpush.msra.mxu0 0.0
    %168 = vmatpush.msra.mxu0 0.0
    %169 = vmatpush.msra.mxu0 0.0
    %170 = vmatpush.msra.mxu0 0.0
    %171 = vmatpush.msra.mxu0 0.0
    %172 = vmatpush.msra.mxu0 %v155
    %173 = vmatmul.f32.gmra.mxu0 %v152
    %v174 = vpop.f32.mrf.mxu0
    %v175 = vadd.f32 0.0, %v174
    %176 = vdwg.mxu0
    %v177 = vadd.f32 %v127, %v175
    %s178 = sld [smem:[#allocation2]]
    %v179 = vstv %s178
    %v180 = vadd.f32 %v177, %v179
    %181 = vst [vmem:[#allocation6] sm:$0xff] %v180
    // Predicated region
    $region22: #{tpu_custom_call.1} parent=1 // pred_check
      _
    $region23: #{tpu_custom_call.1} parent=1 // pred_check_branch
      %183 = sbr.rel (0) target = $region25
    $region24: #{tpu_custom_call.1} parent=1 // pred_region
      %185 = vsyncadd [#allocation5], 0
      %s187 = sshll.u32 [#allocation6], 4
      %s188 = int_to_ptr.vmem [resolvable:$true] %s187
      %s189 = sshll.u32 %s4, 4
      %s190 = int_to_ptr.hbm [resolvable:$true] %s189
      %192 = dma.vmem_to_hbm [thread:$0]  %s188, 128, %s190, [#allocation5]
    $region25: #{tpu_custom_call.1} parent=1 // pred_fallthru
      _
    // Predicated region
    $region26: #{tpu_custom_call.1} parent=1 // pred_check
      _
    $region27: #{tpu_custom_call.1} parent=1 // pred_check_branch
      %194 = sbr.rel (0) target = $region29
    $region28: #{tpu_custom_call.1} parent=1 // pred_region
      %196 = dma.done [#allocation5], 128
    $region29: #{tpu_custom_call.1} parent=1 // pred_fallthru
      _
    %197 = vsyncpa [#allocation4], 1
    %198 = vsyncpa [#allocation5], 1

</llo_original>
